<compile_context>
chip_gen: v7x
topology: tpu7x:2x2x1
jax: 0.10.0
libtpu: 0.0.40
codegen_flags: <defaults>
</compile_context>

<pallas_src>
import functools

import jax
import jax.numpy as jnp
from jax.experimental import pallas as pl
from jax.experimental.pallas import tpu as pltpu


def _round_up(n, m):
    return ((n + m - 1) // m) * m


def _mlp_kernel(x_ref, w1_ref, b1_ref, w2_ref, b2_ref, o_ref, *, activation):
    # fc1: cast x to the MXU compute dtype in-kernel (avoids a wrapper cast +
    # extra HBM round-trip), accumulate in f32.
    x = x_ref[...].astype(w1_ref.dtype)
    h = jnp.dot(x, w1_ref[...], preferred_element_type=jnp.float32)
    h = h + b1_ref[...]                      # (1, H_pad) broadcasts over rows

    # Activation in f32 (keeps v5e off the nonexistent bf16 VPU/EUP path).
    if activation == "relu":
        h = jnp.maximum(h, 0.0)
    elif activation == "tanh":
        h = jnp.tanh(h)
    elif activation in (None, "identity", "none"):
        pass  # nn.Identity
    else:
        raise ValueError(f"unsupported activation: {activation}")

    # fc2: h @ W2 + b2 (bf16 MXU, f32 accumulation; bias add in f32).
    y = jnp.dot(h.astype(w2_ref.dtype), w2_ref[...],
                preferred_element_type=jnp.float32)
    o_ref[...] = (y + b2_ref[...]).astype(o_ref.dtype)


def prepare_params(w1, b1, w2, b2, *, compute_dtype=jnp.bfloat16):
    """One-time parameter prep: pad hidden dim to 128 lanes, cast weights to bf16.

    w1: [D_in, H]  (PyTorch fc1.weight.T)    b1: [H]
    w2: [H, L]     (PyTorch fc2.weight.T)    b2: [L]

    Zero-padding the hidden dim is semantics-preserving: padded hidden units get
    bias 0, activation(0) = 0, and zero outgoing fc2 weights. D_in and L are left
    unpadded (full-dim block shapes are legal; avoids wasted HBM traffic).
    """
    D_in, H = w1.shape
    H2, L = w2.shape
    assert H2 == H
    H_pad = _round_up(max(H, 128), 128)
    w1_p = jnp.pad(w1, ((0, 0), (0, H_pad - H))).astype(compute_dtype)
    w2_p = jnp.pad(w2, ((0, H_pad - H), (0, 0))).astype(compute_dtype)
    b1_p = jnp.pad(jnp.reshape(b1, (1, H)),
                   ((0, 0), (0, H_pad - H))).astype(jnp.float32)
    b2_p = jnp.reshape(b2, (1, L)).astype(jnp.float32)
    return w1_p, b1_p, w2_p, b2_p


# Below this row count: one grid step (everything fits VMEM trivially).
# Above: stream 512-row batch tiles (>= 85% of HBM roofline per tile sweep data).
_SINGLE_BLOCK_MAX_ROWS = 512


def one_layer_net_forward(x, w1_p, b1_p, w2_p, b2_p, *, activation="relu"):
    """Fused fc1 -> activ -> fc2. x: [B, D_in] f32; params from prepare_params."""
    B, D_in = x.shape
    assert w1_p.shape[0] == D_in
    H_pad = w1_p.shape[1]
    L = w2_p.shape[1]

    if B <= _SINGLE_BLOCK_MAX_ROWS:
        # Single grid step: blocks == full arrays (legal for any B / D_in / L).
        # One DMA-in, two matmuls, one DMA-out; no per-step overhead, no padding,
        # no megacore split (per-TC work here is sub-microsecond).
        block_b, B_pad = B, B
        semantics = ("arbitrary",)
        wspec = lambda shape: pl.BlockSpec(shape, lambda b: (0, 0))
    else:
        # Large batch: 512-row tiles (multiple of 256 for the v6e/v7x MXU and of
        # 128 for v5e) streamed over a batch grid; weights/biases stay
        # VMEM-resident single-buffered (constant index_map). Megacore sharding
        # now has enough per-TC work to amortize its fixed cost.
        block_b = _SINGLE_BLOCK_MAX_ROWS
        B_pad = _round_up(B, block_b)
        semantics = ("parallel",)
        wspec = lambda shape: pl.BlockSpec(shape, lambda b: (0, 0),
                                           pipeline_mode=pl.Buffered(1))

    x_p = x if B_pad == B else jnp.pad(x, ((0, B_pad - B), (0, 0)))
    n_tiles = B_pad // block_b

    cost = pl.CostEstimate(
        flops=2 * B_pad * (D_in * H_pad + H_pad * L),
        transcendentals=(B_pad * H_pad) if activation == "tanh" else 0,
        bytes_accessed=(B_pad * D_in * 4          # x (f32, cast in-kernel)
                        + D_in * H_pad * 2        # w1 (bf16)
                        + H_pad * L * 2           # w2 (bf16)
                        + H_pad * 4 + L * 4       # biases (f32)
                        + B_pad * L * 4),         # out (f32)
    )

    out = pl.pallas_call(
        functools.partial(_mlp_kernel, activation=activation),
        out_shape=jax.ShapeDtypeStruct((B_pad, L), jnp.float32),
        grid=(n_tiles,),
        in_specs=[
            pl.BlockSpec((block_b, D_in), lambda b: (b, 0)),  # x: streamed per tile
            wspec((D_in, H_pad)),                              # w1: VMEM-resident
            wspec((1, H_pad)),                                 # b1: VMEM-resident
            wspec((H_pad, L)),                                 # w2: VMEM-resident
            wspec((1, L)),                                     # b2: VMEM-resident
        ],
        out_specs=pl.BlockSpec((block_b, L), lambda b: (b, 0)),
        compiler_params=pltpu.CompilerParams(dimension_semantics=semantics),
        cost_estimate=cost,
    )(x_p, w1_p, b1_p, w2_p, b2_p)

    # TODO(synk): in a real pipeline, fuse the downstream consumer (loss/softmax)
    # under the same jit instead of emitting a standalone [B, L] slab.
    return out if B_pad == B else out[:B]


if __name__ == "__main__":
    # Config implied by the module: data_config.input_dim, teacher_config.hidden_dim,
    # data_config.num_labels, teacher_config.bias=True, activation='relu'.
    batch = 128
    input_dim = 32
    hidden_dim = 64
    num_labels = 8
    activation = "relu"

    key = jax.random.PRNGKey(0)
    kx, kw1, kb1, kw2, kb2 = jax.random.split(key, 5)

    x = jax.random.normal(kx, (batch, input_dim), dtype=jnp.float32)

    # Deterministic PyTorch-Linear-style init: U(-1/sqrt(fan_in), 1/sqrt(fan_in)).
    bound1 = 1.0 / (input_dim ** 0.5)
    w1 = jax.random.uniform(kw1, (input_dim, hidden_dim), jnp.float32,
                            -bound1, bound1)          # fc1.weight.T
    b1 = jax.random.uniform(kb1, (hidden_dim,), jnp.float32, -bound1, bound1)

    bound2 = 1.0 / (hidden_dim ** 0.5)
    w2 = jax.random.uniform(kw2, (hidden_dim, num_labels), jnp.float32,
                            -bound2, bound2)          # fc2.weight.T
    b2 = jax.random.uniform(kb2, (num_labels,), jnp.float32, -bound2, bound2)

    # Params are padded/cast once; the forward takes the prepared params.
    params = prepare_params(w1, b1, w2, b2)
    fwd = jax.jit(functools.partial(one_layer_net_forward, activation=activation))

    out = jax.block_until_ready(fwd(x, *params))

    # Pure-JAX reference replicating the bf16-storage / f32-accumulate numerics.
    bf = jnp.bfloat16
    x_b = x.astype(bf).astype(jnp.float32)
    w1_b = w1.astype(bf).astype(jnp.float32)
    w2_b = w2.astype(bf).astype(jnp.float32)
    h_ref = jnp.maximum(x_b @ w1_b + b1[None, :], 0.0)
    ref = h_ref.astype(bf).astype(jnp.float32) @ w2_b + b2[None, :]

    assert out.shape == (batch, num_labels)
    max_err = float(jnp.max(jnp.abs(out - ref)))
    assert jnp.allclose(out, ref, atol=2e-3, rtol=2e-3), max_err

    print("KERNEL_OK")
</pallas_src>

<mosaic_0001>
module attributes {stable_mosaic.version = 11 : i64} {
  func.func @_mlp_kernel(%arg0: i32, %arg1: memref<128x32xf32, #tpu.memory_space<vmem>>, %arg2: memref<32x128xbf16, #tpu.memory_space<vmem>>, %arg3: memref<1x128xf32, #tpu.memory_space<vmem>>, %arg4: memref<128x8xbf16, #tpu.memory_space<vmem>>, %arg5: memref<1x8xf32, #tpu.memory_space<vmem>>, %arg6: memref<128x8xf32, #tpu.memory_space<vmem>>) attributes {dimension_semantics = [#tpu.dimension_semantics<arbitrary>], iteration_bounds = array<i64: 1>, scalar_prefetch = 0 : i64, scratch_operands = 0 : i64, tpu.core_type = #tpu.core_type<tc>, window_params = [{transform_indices = @transform_0, window_bounds = array<i64: 128, 32>}, {pipeline_mode = #tpu.pipeline_mode<synchronous>, transform_indices = @transform_1, window_bounds = array<i64: 32, 128>}, {pipeline_mode = #tpu.pipeline_mode<synchronous>, transform_indices = @transform_2, window_bounds = array<i64: 1, 128>}, {pipeline_mode = #tpu.pipeline_mode<synchronous>, transform_indices = @transform_3, window_bounds = array<i64: 128, 8>}, {pipeline_mode = #tpu.pipeline_mode<synchronous>, transform_indices = @transform_4, window_bounds = array<i64: 1, 8>}, {transform_indices = @transform_5, window_bounds = array<i64: 128, 8>}]} {
    %c0 = arith.constant 0 : index
    %c0_0 = arith.constant 0 : index
    %0 = vector.load %arg1[%c0, %c0_0] : memref<128x32xf32, #tpu.memory_space<vmem>>, vector<128x32xf32>
    %1 = arith.truncf %0 : vector<128x32xf32> to vector<128x32xbf16>
    %c0_1 = arith.constant 0 : index
    %c0_2 = arith.constant 0 : index
    %2 = vector.load %arg2[%c0_1, %c0_2] : memref<32x128xbf16, #tpu.memory_space<vmem>>, vector<32x128xbf16>
    %cst = arith.constant dense<0.000000e+00> : vector<128x128xf32>
    %3 = tpu.matmul %1, %2, %cst {dimension_numbers = #tpu.dot_dimension_numbers<[1], [0], [0], [1], [0, 0, 1, 1], [], []>} : vector<128x32xbf16>, vector<32x128xbf16>, vector<128x128xf32> -> vector<128x128xf32>
    %c0_3 = arith.constant 0 : index
    %c0_4 = arith.constant 0 : index
    %4 = vector.load %arg3[%c0_3, %c0_4] : memref<1x128xf32, #tpu.memory_space<vmem>>, vector<1x128xf32>
    %5 = vector.broadcast %4 : vector<1x128xf32> to vector<128x128xf32>
    %6 = arith.addf %3, %5 : vector<128x128xf32>
    %cst_5 = arith.constant 0.000000e+00 : f32
    %7 = vector.broadcast %cst_5 : f32 to vector<128x128xf32>
    %8 = arith.maximumf %6, %7 : vector<128x128xf32>
    %9 = arith.truncf %8 : vector<128x128xf32> to vector<128x128xbf16>
    %c0_6 = arith.constant 0 : index
    %c0_7 = arith.constant 0 : index
    %10 = vector.load %arg4[%c0_6, %c0_7] : memref<128x8xbf16, #tpu.memory_space<vmem>>, vector<128x8xbf16>
    %cst_8 = arith.constant dense<0.000000e+00> : vector<128x8xf32>
    %11 = tpu.matmul %9, %10, %cst_8 {dimension_numbers = #tpu.dot_dimension_numbers<[1], [0], [0], [1], [0, 0, 1, 1], [], []>} : vector<128x128xbf16>, vector<128x8xbf16>, vector<128x8xf32> -> vector<128x8xf32>
    %c0_9 = arith.constant 0 : index
    %c0_10 = arith.constant 0 : index
    %12 = vector.load %arg5[%c0_9, %c0_10] : memref<1x8xf32, #tpu.memory_space<vmem>>, vector<1x8xf32>
    %13 = vector.broadcast %12 : vector<1x8xf32> to vector<128x8xf32>
    %14 = arith.addf %11, %13 : vector<128x8xf32>
    %c0_11 = arith.constant 0 : index
    %c0_12 = arith.constant 0 : index
    %15 = vector.load %arg6[%c0_11, %c0_12] : memref<128x8xf32, #tpu.memory_space<vmem>>, vector<128x8xf32>
    tpu.vector_store %arg6[%c0_11, %c0_12], %14 {strides = array<i32>} : memref<128x8xf32, #tpu.memory_space<vmem>>, vector<128x8xf32>,
    return
  }
  func.func @transform_0(%arg0: i32) -> (i32, i32) {
    %c0_i32 = arith.constant 0 : i32
    %c0_i32_0 = arith.constant 0 : i32
    return %arg0, %c0_i32 : i32, i32
  }
  func.func @transform_1(%arg0: i32) -> (i32, i32) {
    %c0_i32 = arith.constant 0 : i32
    %c0_i32_0 = arith.constant 0 : i32
    %c0_i32_1 = arith.constant 0 : i32
    return %c0_i32, %c0_i32_0 : i32, i32
  }
  func.func @transform_2(%arg0: i32) -> (i32, i32) {
    %c0_i32 = arith.constant 0 : i32
    %c0_i32_0 = arith.constant 0 : i32
    %c0_i32_1 = arith.constant 0 : i32
    return %c0_i32, %c0_i32_0 : i32, i32
  }
  func.func @transform_3(%arg0: i32) -> (i32, i32) {
    %c0_i32 = arith.constant 0 : i32
    %c0_i32_0 = arith.constant 0 : i32
    %c0_i32_1 = arith.constant 0 : i32
    return %c0_i32, %c0_i32_0 : i32, i32
  }
  func.func @transform_4(%arg0: i32) -> (i32, i32) {
    %c0_i32 = arith.constant 0 : i32
    %c0_i32_0 = arith.constant 0 : i32
    %c0_i32_1 = arith.constant 0 : i32
    return %c0_i32, %c0_i32_0 : i32, i32
  }
  func.func @transform_5(%arg0: i32) -> (i32, i32) {
    %c0_i32 = arith.constant 0 : i32
    %c0_i32_0 = arith.constant 0 : i32
    return %arg0, %c0_i32 : i32, i32
  }
}

</mosaic_0001>

<llo_original>
// kernel: one_layer_net_forward.1
$region0: #{one_layer_net_forward.1}
  #allocation0 [shape = 'u32[]', space=smem, size = 0x4, offset = 0x4, fixed_abs, tag = 'smem constant byte address 0x4 - core index']
  #allocation1 [shape = 'u32[144,128]{1,0:T(1,128)}', space=vmem, size = 0x12000, scoped, tag = 'internal scratch']
  %s0 = inlined_call_operand.vmem [shape: f32[128,32], index: 0, kind: input, shape index: {}]
  %s1 = inlined_call_operand.vmem [shape: bf16[32,128], index: 1, kind: input, shape index: {}]
  %s2 = inlined_call_operand.vmem [shape: f32[1,128], index: 2, kind: input, shape index: {}]
  %s3 = inlined_call_operand.vmem [shape: bf16[128,8], index: 3, kind: input, shape index: {}]
  %s4 = inlined_call_operand.vmem [shape: f32[1,8], index: 4, kind: input, shape index: {}]
  %s5 = inlined_call_operand.vmem [shape: f32[128,8], index: 5, kind: output, shape index: {}]
  %s6 = sld [smem:[#allocation0]]
  $region30: #{one_layer_net_forward.1} parent=0
    _
  %s8 = ssub.s32 1, %s6
  %s9 = scalar_select 0, %s8, %s6
  // Predicated region
  $region2: #{one_layer_net_forward.1} parent=0 // pred_check
    _
  $region3: #{one_layer_net_forward.1} parent=0 // pred_check_branch
    %11 = sbr.rel (0) target = $region5
  $region4: #{one_layer_net_forward.1} parent=0 // pred_region
    _
  $region5: #{one_layer_net_forward.1} parent=0 // pred_fallthru
    _
  // Predicated region
  $region6: #{one_layer_net_forward.1} parent=0 // pred_check
    _
  $region7: #{one_layer_net_forward.1} parent=0 // pred_check_branch
    %13 = sbr.rel (0) target = $region9
  $region8: #{one_layer_net_forward.1} parent=0 // pred_region
    _
  $region9: #{one_layer_net_forward.1} parent=0 // pred_fallthru
    _
  // Predicated region
  $region10: #{one_layer_net_forward.1} parent=0 // pred_check
    _
  $region11: #{one_layer_net_forward.1} parent=0 // pred_check_branch
    %15 = sbr.rel (0) target = $region13
  $region12: #{one_layer_net_forward.1} parent=0 // pred_region
    _
  $region13: #{one_layer_net_forward.1} parent=0 // pred_fallthru
    _
  // Predicated region
  $region14: #{one_layer_net_forward.1} parent=0 // pred_check
    _
  $region15: #{one_layer_net_forward.1} parent=0 // pred_check_branch
    %17 = sbr.rel (0) target = $region17
  $region16: #{one_layer_net_forward.1} parent=0 // pred_region
    _
  $region17: #{one_layer_net_forward.1} parent=0 // pred_fallthru
    _
  // Predicated region
  $region18: #{one_layer_net_forward.1} parent=0 // pred_check
    _
  $region19: #{one_layer_net_forward.1} parent=0 // pred_check_branch
    %19 = sbr.rel (0) target = $region21
  $region20: #{one_layer_net_forward.1} parent=0 // pred_region
    _
  $region21: #{one_layer_net_forward.1} parent=0 // pred_fallthru
    _
  %v21 = vld [vmem:[%s0] sm:$0xff]
  %v22 = vld [vmem:[%s0 + $0x8] sm:$0xff]
  %v23 = vld [vmem:[%s0 + $0x10] sm:$0xff]
  %v24 = vld [vmem:[%s0 + $0x18] sm:$0xff]
  %v25 = vld [vmem:[%s0 + $0x20] sm:$0xff]
  %v26 = vld [vmem:[%s0 + $0x28] sm:$0xff]
  %v27 = vld [vmem:[%s0 + $0x30] sm:$0xff]
  %v28 = vld [vmem:[%s0 + $0x38] sm:$0xff]
  %v29 = vld [vmem:[%s0 + $0x40] sm:$0xff]
  %v30 = vld [vmem:[%s0 + $0x48] sm:$0xff]
  %v31 = vld [vmem:[%s0 + $0x50] sm:$0xff]
  %v32 = vld [vmem:[%s0 + $0x58] sm:$0xff]
  %v33 = vld [vmem:[%s0 + $0x60] sm:$0xff]
  %v34 = vld [vmem:[%s0 + $0x68] sm:$0xff]
  %v35 = vld [vmem:[%s0 + $0x70] sm:$0xff]
  %v36 = vld [vmem:[%s0 + $0x78] sm:$0xff]
  %v37 = vpack.c.bf16 %v22, %v21
  %v38 = vpack.c.bf16 %v24, %v23
  %v39 = vpack.c.bf16 %v26, %v25
  %v40 = vpack.c.bf16 %v28, %v27
  %v41 = vpack.c.bf16 %v30, %v29
  %v42 = vpack.c.bf16 %v32, %v31
  %v43 = vpack.c.bf16 %v34, %v33
  %v44 = vpack.c.bf16 %v36, %v35
  %v45 = vld [vmem:[%s1] sm:$0xf]
  %v46 = vld [vmem:[%s1 + $0x4] sm:$0xf]
  %v47 = vld [vmem:[%s1 + $0x8] sm:$0xf]
  %v48 = vld [vmem:[%s1 + $0xc] sm:$0xf]
  %v49 = vld [vmem:[%s2] sm:$0x1]
  %v51 = vlaneseq
  %v52 = vshrl.u32 %v51, 7
  %v53 = vsub.s32 0, %v52
  %v54 = vrot.slane %v49, %v53
  %v60 = vunpack.c.l.b16 %v45
  %v61 = vunpack.c.l.b16 %v46
  %v62 = vunpack.c.l.b16 %v47
  %v63 = vunpack.c.l.b16 %v48
  %v64 = vpack.c.b16 %v61, %v60
  %v65 = vpack.c.b16 %v63, %v62
  %vm68 = vcmask 261120
  %v70 = vsel %vm68, %v37, 0
  %v73 = vsel %vm68, %v38, 0
  %v76 = vsel %vm68, %v39, 0
  %v79 = vsel %vm68, %v40, 0
  %v82 = vsel %vm68, %v41, 0
  %v85 = vsel %vm68, %v42, 0
  %v88 = vsel %vm68, %v43, 0
  %v91 = vsel %vm68, %v44, 0
  %93 = vmatprep.subr.bf16.mxu0 0
  %94 = vmatpush1.bf16.msra.mxu0 %v64
  %95 = vmatprep.subr.bf16.mxu0 0
  %96 = vmatpush1.bf16.msra.mxu0 %v65
  %97 = vmatprep.subr.bf16.mxu0 0
  %98 = vmatpush1.bf16.msra.mxu0 0
  %99 = vmatprep.subr.bf16.mxu0 0
  %100 = vmatpush1.bf16.msra.mxu0 0
  %101 = vmatprep.subr.bf16.mxu0 0
  %102 = vmatpush1.bf16.msra.mxu0 0
  %103 = vmatprep.subr.bf16.mxu0 0
  %104 = vmatpush1.bf16.msra.mxu0 0
  %105 = vmatprep.subr.bf16.mxu0 0
  %106 = vmatpush1.bf16.msra.mxu0 0
  %107 = vmatprep.subr.bf16.mxu0 0
  %108 = vmatpush1.bf16.msra.mxu0 0
  %109 = vmatprep.subr.bf16.mxu0 0
  %110 = vmatpush1.bf16.msra.mxu0 0
  %111 = vmatprep.subr.bf16.mxu0 0
  %112 = vmatpush1.bf16.msra.mxu0 0
  %113 = vmatprep.subr.bf16.mxu0 0
  %114 = vmatpush1.bf16.msra.mxu0 0
  %115 = vmatprep.subr.bf16.mxu0 0
  %116 = vmatpush1.bf16.msra.mxu0 0
  %117 = vmatprep.subr.bf16.mxu0 0
  %118 = vmatpush1.bf16.msra.mxu0 0
  %119 = vmatprep.subr.bf16.mxu0 0
  %120 = vmatpush1.bf16.msra.mxu0 0
  %121 = vmatprep.subr.bf16.mxu0 0
  %122 = vmatpush1.bf16.msra.mxu0 0
  %123 = vmatprep.subr.bf16.mxu0 0
  %124 = vmatpush1.bf16.msra.mxu0 0
  %125 = vmatprep.mubr.bf16.mxu0 0
  %126 = vmatmul.mubr.bf16.gmra.mrb[0].mxu0 %v70
  %v127 = vpop.f32.mrb[0].mxu0
  %v128 = vadd.f32 %v54, %v127
  %v129 = vpop.f32.mrb[0].mxu0
  %v130 = vpop.f32.mrb[0].mxu0
  %v131 = vadd.f32 %v54, %v130
  %v132 = vpop.f32.mrb[0].mxu0
  %133 = vmatprep.mubr.bf16.mxu0 0
  %134 = vmatmul.mubr.bf16.gmra.mrb[0].mxu0 %v73
  %v135 = vpop.f32.mrb[0].mxu0
  %v136 = vadd.f32 %v54, %v135
  %v137 = vpop.f32.mrb[0].mxu0
  %v138 = vpop.f32.mrb[0].mxu0
  %v139 = vadd.f32 %v54, %v138
  %v140 = vpop.f32.mrb[0].mxu0
  %141 = vmatprep.mubr.bf16.mxu0 0
  %142 = vmatmul.mubr.bf16.gmra.mrb[0].mxu0 %v76
  %v143 = vpop.f32.mrb[0].mxu0
  %v144 = vadd.f32 %v54, %v143
  %v145 = vpop.f32.mrb[0].mxu0
  %v146 = vpop.f32.mrb[0].mxu0
  %v147 = vadd.f32 %v54, %v146
  %v148 = vpop.f32.mrb[0].mxu0
  %149 = vmatprep.mubr.bf16.mxu0 0
  %150 = vmatmul.mubr.bf16.gmra.mrb[0].mxu0 %v79
  %v151 = vpop.f32.mrb[0].mxu0
  %v152 = vadd.f32 %v54, %v151
  %v153 = vpop.f32.mrb[0].mxu0
  %v154 = vpop.f32.mrb[0].mxu0
  %v155 = vadd.f32 %v54, %v154
  %v156 = vpop.f32.mrb[0].mxu0
  %157 = vmatprep.mubr.bf16.mxu0 0
  %158 = vmatmul.mubr.bf16.gmra.mrb[0].mxu0 %v82
  %v159 = vpop.f32.mrb[0].mxu0
  %v160 = vadd.f32 %v54, %v159
  %v161 = vpop.f32.mrb[0].mxu0
  %v162 = vpop.f32.mrb[0].mxu0
  %v163 = vadd.f32 %v54, %v162
  %v164 = vpop.f32.mrb[0].mxu0
  %165 = vmatprep.mubr.bf16.mxu0 0
  %166 = vmatmul.mubr.bf16.gmra.mrb[0].mxu0 %v85
  %v167 = vpop.f32.mrb[0].mxu0
  %v168 = vadd.f32 %v54, %v167
  %v169 = vpop.f32.mrb[0].mxu0
  %v170 = vpop.f32.mrb[0].mxu0
  %v171 = vadd.f32 %v54, %v170
  %v172 = vpop.f32.mrb[0].mxu0
  %173 = vmatprep.mubr.bf16.mxu0 0
  %174 = vmatmul.mubr.bf16.gmra.mrb[0].mxu0 %v88
  %v175 = vpop.f32.mrb[0].mxu0
  %v176 = vadd.f32 %v54, %v175
  %v177 = vpop.f32.mrb[0].mxu0
  %v178 = vpop.f32.mrb[0].mxu0
  %v179 = vadd.f32 %v54, %v178
  %v180 = vpop.f32.mrb[0].mxu0
  %181 = vmatprep.mubr.bf16.mxu0 0
  %182 = vmatmul.mubr.bf16.gmra.mrb[0].mxu0 %v91
  %v183 = vpop.f32.mrb[0].mxu0
  %v184 = vadd.f32 %v54, %v183
  %v185 = vpop.f32.mrb[0].mxu0
  %v186 = vpop.f32.mrb[0].mxu0
  %v187 = vadd.f32 %v54, %v186
  %v188 = vpop.f32.mrb[0].mxu0
  %189 = vdwg.mxu0
  %v190 = vmax.f32 %v128, 0.0
  %v191 = vmax.f32 %v131, 0.0
  %v192 = vmax.f32 %v136, 0.0
  %v193 = vmax.f32 %v139, 0.0
  %v194 = vmax.f32 %v144, 0.0
  %v195 = vmax.f32 %v147, 0.0
  %v196 = vmax.f32 %v152, 0.0
  %v197 = vmax.f32 %v155, 0.0
  %v198 = vmax.f32 %v160, 0.0
  %v199 = vmax.f32 %v163, 0.0
  %v200 = vmax.f32 %v168, 0.0
  %v201 = vmax.f32 %v171, 0.0
  %v202 = vmax.f32 %v176, 0.0
  %v203 = vmax.f32 %v179, 0.0
  %v204 = vmax.f32 %v184, 0.0
  %v205 = vmax.f32 %v187, 0.0
  %v206 = vpack.c.bf16 %v191, %v190
  %v207 = vpack.c.bf16 %v193, %v192
  %v208 = vpack.c.bf16 %v195, %v194
  %v209 = vpack.c.bf16 %v197, %v196
  %v210 = vpack.c.bf16 %v199, %v198
  %v211 = vpack.c.bf16 %v201, %v200
  %v212 = vpack.c.bf16 %v203, %v202
  %v213 = vpack.c.bf16 %v205, %v204
  %v214 = vld [vmem:[%s3] sm:$0xf]
  %v215 = vld [vmem:[%s3 + $0x4] sm:$0xf]
  %v216 = vld [vmem:[%s3 + $0x8] sm:$0xf]
  %v217 = vld [vmem:[%s3 + $0xc] sm:$0xf]
  %v218 = vld [vmem:[%s3 + $0x10] sm:$0xf]
  %v219 = vld [vmem:[%s3 + $0x14] sm:$0xf]
  %v220 = vld [vmem:[%s3 + $0x18] sm:$0xf]
  %v221 = vld [vmem:[%s3 + $0x1c] sm:$0xf]
  %v222 = vld [vmem:[%s3 + $0x20] sm:$0xf]
  %v223 = vld [vmem:[%s3 + $0x24] sm:$0xf]
  %v224 = vld [vmem:[%s3 + $0x28] sm:$0xf]
  %v225 = vld [vmem:[%s3 + $0x2c] sm:$0xf]
  %v226 = vld [vmem:[%s3 + $0x30] sm:$0xf]
  %v227 = vld [vmem:[%s3 + $0x34] sm:$0xf]
  %v228 = vld [vmem:[%s3 + $0x38] sm:$0xf]
  %v229 = vld [vmem:[%s3 + $0x3c] sm:$0xf]
  %v230 = vld [vmem:[%s4] sm:$0x1]
  %v232 = vlaneseq
  %v233 = vshrl.u32 %v232, 7
  %v234 = vsub.s32 0, %v233
  %v235 = vrot.slane %v230, %v234
  %v253 = vunpack.c.l.b16 %v214
  %v254 = vunpack.c.l.b16 %v215
  %v255 = vunpack.c.l.b16 %v216
  %v256 = vunpack.c.l.b16 %v217
  %v257 = vunpack.c.l.b16 %v218
  %v258 = vunpack.c.l.b16 %v219
  %v259 = vunpack.c.l.b16 %v220
  %v260 = vunpack.c.l.b16 %v221
  %v261 = vunpack.c.l.b16 %v222
  %v262 = vunpack.c.l.b16 %v223
  %v263 = vunpack.c.l.b16 %v224
  %v264 = vunpack.c.l.b16 %v225
  %v265 = vunpack.c.l.b16 %v226
  %v266 = vunpack.c.l.b16 %v227
  %v267 = vunpack.c.l.b16 %v228
  %v268 = vunpack.c.l.b16 %v229
  %v269 = vpack.c.b16 %v254, %v253
  %v270 = vpack.c.b16 %v256, %v255
  %v271 = vpack.c.b16 %v258, %v257
  %v272 = vpack.c.b16 %v260, %v259
  %v273 = vpack.c.b16 %v262, %v261
  %v274 = vpack.c.b16 %v264, %v263
  %v275 = vpack.c.b16 %v266, %v265
  %v276 = vpack.c.b16 %v268, %v267
  %285 = vmatprep.subr.bf16.mxu0 0
  %286 = vmatpush1.bf16.msra.mxu0 %v269
  %287 = vmatprep.subr.bf16.mxu0 0
  %288 = vmatpush1.bf16.msra.mxu0 %v270
  %289 = vmatprep.subr.bf16.mxu0 0
  %290 = vmatpush1.bf16.msra.mxu0 %v271
  %291 = vmatprep.subr.bf16.mxu0 0
  %292 = vmatpush1.bf16.msra.mxu0 %v272
  %293 = vmatprep.subr.bf16.mxu0 0
  %294 = vmatpush1.bf16.msra.mxu0 %v273
  %295 = vmatprep.subr.bf16.mxu0 0
  %296 = vmatpush1.bf16.msra.mxu0 %v274
  %297 = vmatprep.subr.bf16.mxu0 0
  %298 = vmatpush1.bf16.msra.mxu0 %v275
  %299 = vmatprep.subr.bf16.mxu0 0
  %300 = vmatpush1.bf16.msra.mxu0 %v276
  %301 = vmatprep.subr.bf16.mxu0 0
  %302 = vmatpush1.bf16.msra.mxu0 0
  %303 = vmatprep.subr.bf16.mxu0 0
  %304 = vmatpush1.bf16.msra.mxu0 0
  %305 = vmatprep.subr.bf16.mxu0 0
  %306 = vmatpush1.bf16.msra.mxu0 0
  %307 = vmatprep.subr.bf16.mxu0 0
  %308 = vmatpush1.bf16.msra.mxu0 0
  %309 = vmatprep.subr.bf16.mxu0 0
  %310 = vmatpush1.bf16.msra.mxu0 0
  %311 = vmatprep.subr.bf16.mxu0 0
  %312 = vmatpush1.bf16.msra.mxu0 0
  %313 = vmatprep.subr.bf16.mxu0 0
  %314 = vmatpush1.bf16.msra.mxu0 0
  %315 = vmatprep.subr.bf16.mxu0 0
  %316 = vmatpush1.bf16.msra.mxu0 0
  %317 = vmatprep.mubr.bf16.mxu0 0
  %318 = vmatmul.mubr.bf16.gmra.mrb[0].mxu0 %v206
  %v319 = vpop.f32.mrb[0].mxu0
  %v320 = vadd.f32 %v235, %v319
  %v321 = vpop.f32.mrb[0].mxu0
  %v322 = vpop.f32.mrb[0].mxu0
  %v323 = vadd.f32 %v235, %v322
  %v324 = vpop.f32.mrb[0].mxu0
  %325 = vmatprep.mubr.bf16.mxu0 0
  %326 = vmatmul.mubr.bf16.gmra.mrb[0].mxu0 %v207
  %v327 = vpop.f32.mrb[0].mxu0
  %v328 = vadd.f32 %v235, %v327
  %v329 = vpop.f32.mrb[0].mxu0
  %v330 = vpop.f32.mrb[0].mxu0
  %v331 = vadd.f32 %v235, %v330
  %v332 = vpop.f32.mrb[0].mxu0
  %333 = vmatprep.mubr.bf16.mxu0 0
  %334 = vmatmul.mubr.bf16.gmra.mrb[0].mxu0 %v208
  %v335 = vpop.f32.mrb[0].mxu0
  %v336 = vadd.f32 %v235, %v335
  %v337 = vpop.f32.mrb[0].mxu0
  %v338 = vpop.f32.mrb[0].mxu0
  %v339 = vadd.f32 %v235, %v338
  %v340 = vpop.f32.mrb[0].mxu0
  %341 = vmatprep.mubr.bf16.mxu0 0
  %342 = vmatmul.mubr.bf16.gmra.mrb[0].mxu0 %v209
  %v343 = vpop.f32.mrb[0].mxu0
  %v344 = vadd.f32 %v235, %v343
  %v345 = vpop.f32.mrb[0].mxu0
  %v346 = vpop.f32.mrb[0].mxu0
  %v347 = vadd.f32 %v235, %v346
  %v348 = vpop.f32.mrb[0].mxu0
  %349 = vmatprep.mubr.bf16.mxu0 0
  %350 = vmatmul.mubr.bf16.gmra.mrb[0].mxu0 %v210
  %v351 = vpop.f32.mrb[0].mxu0
  %v352 = vadd.f32 %v235, %v351
  %v353 = vpop.f32.mrb[0].mxu0
  %v354 = vpop.f32.mrb[0].mxu0
  %v355 = vadd.f32 %v235, %v354
  %v356 = vpop.f32.mrb[0].mxu0
  %357 = vmatprep.mubr.bf16.mxu0 0
  %358 = vmatmul.mubr.bf16.gmra.mrb[0].mxu0 %v211
  %v359 = vpop.f32.mrb[0].mxu0
  %v360 = vadd.f32 %v235, %v359
  %v361 = vpop.f32.mrb[0].mxu0
  %v362 = vpop.f32.mrb[0].mxu0
  %v363 = vadd.f32 %v235, %v362
  %v364 = vpop.f32.mrb[0].mxu0
  %365 = vmatprep.mubr.bf16.mxu0 0
  %366 = vmatmul.mubr.bf16.gmra.mrb[0].mxu0 %v212
  %v367 = vpop.f32.mrb[0].mxu0
  %v368 = vadd.f32 %v235, %v367
  %v369 = vpop.f32.mrb[0].mxu0
  %v370 = vpop.f32.mrb[0].mxu0
  %v371 = vadd.f32 %v235, %v370
  %v372 = vpop.f32.mrb[0].mxu0
  %373 = vmatprep.mubr.bf16.mxu0 0
  %374 = vmatmul.mubr.bf16.gmra.mrb[0].mxu0 %v213
  %v375 = vpop.f32.mrb[0].mxu0
  %v376 = vadd.f32 %v235, %v375
  %v377 = vpop.f32.mrb[0].mxu0
  %v378 = vpop.f32.mrb[0].mxu0
  %v379 = vadd.f32 %v235, %v378
  %v380 = vpop.f32.mrb[0].mxu0
  %381 = vdwg.mxu0
  %vm382 = vcmask 64512
  %383 = vst.msk [vmem:[%s5] sm:$0xff] %vm382, %v320
  %384 = vst.msk [vmem:[%s5 + $0x8] sm:$0xff] %vm382, %v323
  %385 = vst.msk [vmem:[%s5 + $0x10] sm:$0xff] %vm382, %v328
  %386 = vst.msk [vmem:[%s5 + $0x18] sm:$0xff] %vm382, %v331
  %387 = vst.msk [vmem:[%s5 + $0x20] sm:$0xff] %vm382, %v336
  %388 = vst.msk [vmem:[%s5 + $0x28] sm:$0xff] %vm382, %v339
  %389 = vst.msk [vmem:[%s5 + $0x30] sm:$0xff] %vm382, %v344
  %390 = vst.msk [vmem:[%s5 + $0x38] sm:$0xff] %vm382, %v347
  %391 = vst.msk [vmem:[%s5 + $0x40] sm:$0xff] %vm382, %v352
  %392 = vst.msk [vmem:[%s5 + $0x48] sm:$0xff] %vm382, %v355
  %393 = vst.msk [vmem:[%s5 + $0x50] sm:$0xff] %vm382, %v360
  %394 = vst.msk [vmem:[%s5 + $0x58] sm:$0xff] %vm382, %v363
  %395 = vst.msk [vmem:[%s5 + $0x60] sm:$0xff] %vm382, %v368
  %396 = vst.msk [vmem:[%s5 + $0x68] sm:$0xff] %vm382, %v371
  %397 = vst.msk [vmem:[%s5 + $0x70] sm:$0xff] %vm382, %v376
  %398 = vst.msk [vmem:[%s5 + $0x78] sm:$0xff] %vm382, %v379
  // Predicated region
  $region22: #{one_layer_net_forward.1} parent=0 // pred_check
    _
  $region23: #{one_layer_net_forward.1} parent=0 // pred_check_branch
    %400 = sbr.rel (0) target = $region25
  $region24: #{one_layer_net_forward.1} parent=0 // pred_region
    _
  $region25: #{one_layer_net_forward.1} parent=0 // pred_fallthru
    _
  // Predicated region
  $region26: #{one_layer_net_forward.1} parent=0 // pred_check
    _
  $region27: #{one_layer_net_forward.1} parent=0 // pred_check_branch
    %402 = sbr.rel (0) target = $region29
  $region28: #{one_layer_net_forward.1} parent=0 // pred_region
    _
  $region29: #{one_layer_net_forward.1} parent=0 // pred_fallthru
    _

</llo_original>
